<compile_context>
chip_gen: v6e
topology: v6e:2x2x1
jax: 0.10.0
libtpu: 0.0.40
codegen_flags: <defaults>
</compile_context>

<pallas_src>
import jax
import jax.numpy as jnp
from jax.experimental import pallas as pl
from jax.experimental.pallas import tpu as pltpu


def _round_up(v: int, m: int) -> int:
    return ((v + m - 1) // m) * m


def _make_matmul_kernel(k_axis: int):
    """Tiled matmul kernel; `k_axis` is the grid axis that carries the K reduction."""

    def kernel(x_ref, w_ref, o_ref, acc_ref):
        k = pl.program_id(k_axis)

        @pl.when(k == 0)
        def _init():
            acc_ref[...] = jnp.zeros_like(acc_ref)

        acc_ref[...] += jnp.dot(
            x_ref[...], w_ref[...], preferred_element_type=jnp.float32
        )

        @pl.when(k == pl.num_programs(k_axis) - 1)
        def _store():
            o_ref[...] = acc_ref[...].astype(o_ref.dtype)

    return kernel


def pallas_matmul(x, w, *, tm=None, tn=512, tk=1024, out_dtype=None):
    """out = X @ W via a tiled Pallas TPU kernel with f32 accumulation."""
    B, K = x.shape
    Kw, N = w.shape
    assert K == Kw, "inner dimensions must match"
    out_dtype = out_dtype or x.dtype
    itemsize = lambda dt: jnp.dtype(dt).itemsize

    # ---- tile selection (MXU-shaped, VMEM-budgeted) -------------------------
    # Skinny batch: whole batch is one sublane tile (full extent -> always legal,
    # even for bf16 where a partial tile would need >=16 sublanes).
    if tm is None:
        tm = B if B <= 256 else 256
    # Large lane-dense N / K tiles (multiples of 128, and of 256 when >=256 for
    # the v6e/v7x 2x256x256 MXU); clamp to the 128-rounded array extent so small
    # problems collapse to a single full-extent block.
    tn = min(tn, _round_up(N, 128))
    tk = min(tk, _round_up(K, 128))

    # ---- zero-pad to tile multiples (zero K-padding is safe for accumulation) --
    Bp, Kp, Np = _round_up(B, tm), _round_up(K, tk), _round_up(N, tn)
    xp = x if (Bp == B and Kp == K) else jnp.pad(x, ((0, Bp - B), (0, Kp - K)))
    wp = w if (Kp == K and Np == N) else jnp.pad(w, ((0, Kp - K), (0, Np - N)))

    m_blocks, n_blocks, k_blocks = Bp // tm, Np // tn, Kp // tk

    if m_blocks == 1:
        # Skinny-batch regime: drop the M grid axis entirely (no useless serial
        # loop), keep the reduction axis last. Output stores are wide (tn>=128
        # multiple or full extent) -> unmasked lane-dense vst.
        grid = (n_blocks, k_blocks)
        in_specs = [
            pl.BlockSpec((tm, tk), lambda j, k: (0, k)),
            # NOTE: could sweep pipeline_mode=pl.Buffered(3) on this streamed
            # W operand in the HBM-bound regime.
            pl.BlockSpec((tk, tn), lambda j, k: (k, j)),
        ]
        out_spec = pl.BlockSpec((tm, tn), lambda j, k: (0, j))
        dim_sem = ("parallel", "arbitrary")
        kernel = _make_matmul_kernel(1)
    else:
        grid = (m_blocks, n_blocks, k_blocks)
        in_specs = [
            pl.BlockSpec((tm, tk), lambda i, j, k: (i, k)),
            pl.BlockSpec((tk, tn), lambda i, j, k: (k, j)),
        ]
        out_spec = pl.BlockSpec((tm, tn), lambda i, j, k: (i, j))
        dim_sem = ("parallel", "parallel", "arbitrary")
        kernel = _make_matmul_kernel(2)

    # ---- VMEM budget / compiler params --------------------------------------
    vmem_est = (
        2 * (tm * tk * itemsize(x.dtype)
             + tk * tn * itemsize(w.dtype)
             + tm * tn * itemsize(out_dtype))
        + tm * tn * 4  # f32 accumulator
    )
    cp_kwargs = dict(dimension_semantics=dim_sem)
    if vmem_est > (32 << 20):
        # Raise scoped VMEM only when needed; stay under v7x's 64 MiB physical.
        cp_kwargs["vmem_limit_bytes"] = min(vmem_est + (4 << 20), 48 << 20)

    cost = pl.CostEstimate(
        flops=2 * Bp * Kp * Np,
        transcendentals=0,
        bytes_accessed=int(
            Bp * Kp * itemsize(x.dtype)
            + Kp * Np * itemsize(w.dtype)
            + Bp * Np * itemsize(out_dtype)
        ),
    )

    out = pl.pallas_call(
        kernel,
        out_shape=jax.ShapeDtypeStruct((Bp, Np), out_dtype),
        grid_spec=pltpu.PrefetchScalarGridSpec(
            num_scalar_prefetch=0,
            grid=grid,
            in_specs=in_specs,
            out_specs=out_spec,
            scratch_shapes=[pltpu.VMEM((tm, tn), jnp.float32)],
        ),
        compiler_params=pltpu.CompilerParams(**cp_kwargs),
        cost_estimate=cost,
    )(xp, wp)

    if Bp != B or Np != N:
        out = out[:B, :N]
    return out


class FullColumnParallelLinear:
    """JAX/Pallas port of the PyTorch FullColumnParallelLinear module."""

    def __init__(self, weight, world_size: int, rank: int, compute_dtype=None):
        in_dim, out_dim = weight.shape
        assert out_dim % world_size == 0, "out_dim must be divisible by world_size"
        self.in_dim = in_dim
        self.out_dim = out_dim
        self.world_size = world_size
        self.rank = rank
        self.local_out_dim = out_dim // world_size
        start = rank * self.local_out_dim
        end = start + self.local_out_dim
        # Local column shard of the weight (as in the torch module).
        self.W = jnp.asarray(weight[:, start:end])
        # Full weight kept so GatherParallel can be emulated in-process.
        self._full_weight = jnp.asarray(weight)
        # Optional narrow MXU operand dtype (e.g. jnp.bfloat16); accumulation
        # stays f32 inside the kernel and the output keeps X's dtype.
        self.compute_dtype = compute_dtype

    def forward(self, X):
        local_bsz, in_dim = X.shape
        assert in_dim == self.in_dim
        out_dtype = X.dtype

        # BroadCastParallel.forward is the identity in the forward pass.
        x = X
        w = self._full_weight if self.world_size > 1 else self.W

        if self.compute_dtype is not None:
            x = x.astype(self.compute_dtype)
            w = w.astype(self.compute_dtype)

        # Local column-parallel matmul + GatherParallel emulation fused into ONE
        # kernel launch: the N grid axis spans all ranks' column shards, so
        # out[:, r*local:(r+1)*local] equals rank r's local_out and the concat
        # is free (no per-rank relaunch, no redundant X streaming, no extra
        # HBM copy from jnp.concatenate).
        # TODO(synk): on real multi-chip hardware, replace with the local-shard
        # matmul + a ring all-gather (pltpu.make_async_remote_copy) interleaved
        # with the K loop.
        out = pallas_matmul(x, w, out_dtype=out_dtype)

        assert out.shape == (local_bsz, self.out_dim)
        return out


if __name__ == "__main__":
    # Small shapes consistent with the module's forward: X [batch, in_dim],
    # weight [in_dim, out_dim], out_dim divisible by world_size.
    batch, in_dim, out_dim = 8, 256, 256
    world_size, rank = 2, 0

    key = jax.random.PRNGKey(0)
    kx, kw = jax.random.split(key)
    X = jax.random.normal(kx, (batch, in_dim), dtype=jnp.float32)
    weight = jax.random.normal(kw, (in_dim, out_dim), dtype=jnp.float32) * 0.02

    ref = X @ weight

    # f32 operand path: strict check against the gathered column-parallel result.
    layer = FullColumnParallelLinear(weight, world_size=world_size, rank=rank)
    out = jax.block_until_ready(layer.forward(X))
    assert out.shape == (batch, out_dim)
    assert jnp.allclose(out, ref, atol=1e-4, rtol=1e-4)

    # bf16 operand path (f32 accumulation): looser tolerance.
    layer_bf16 = FullColumnParallelLinear(
        weight, world_size=world_size, rank=rank, compute_dtype=jnp.bfloat16
    )
    out_bf16 = jax.block_until_ready(layer_bf16.forward(X))
    assert out_bf16.shape == (batch, out_dim)
    assert jnp.allclose(out_bf16, ref, atol=5e-2, rtol=5e-2)

    print("KERNEL_OK")
</pallas_src>

<mosaic_0001>
module attributes {stable_mosaic.version = 11 : i64} {
  func.func @kernel(%arg0: i32, %arg1: i32, %arg2: memref<8x256xf32, #tpu.memory_space<vmem>>, %arg3: memref<256x256xf32, #tpu.memory_space<vmem>>, %arg4: memref<8x256xf32, #tpu.memory_space<vmem>>, %arg5: memref<8x256xf32, #tpu.memory_space<vmem>>) attributes {dimension_semantics = [#tpu.dimension_semantics<parallel>, #tpu.dimension_semantics<arbitrary>], iteration_bounds = array<i64: 1, 1>, scalar_prefetch = 0 : i64, scratch_operands = 1 : i64, tpu.core_type = #tpu.core_type<tc>, window_params = [{transform_indices = @transform_0, window_bounds = array<i64: 8, 256>}, {transform_indices = @transform_1, window_bounds = array<i64: 256, 256>}, {transform_indices = @transform_2, window_bounds = array<i64: 8, 256>}]} {
    %c0_i32 = arith.constant 0 : i32
    %0 = arith.cmpi eq, %arg1, %c0_i32 : i32
    %1 = arith.extui %0 : i1 to i32
    %c0_i32_0 = arith.constant 0 : i32
    %2 = arith.cmpi ne, %1, %c0_i32_0 : i32
    scf.if %2 {
      %cst_10 = arith.constant 0.000000e+00 : f32
      %12 = vector.broadcast %cst_10 : f32 to vector<8x256xf32>
      %c0_11 = arith.constant 0 : index
      %c0_12 = arith.constant 0 : index
      %13 = vector.load %arg5[%c0_11, %c0_12] : memref<8x256xf32, #tpu.memory_space<vmem>>, vector<8x256xf32>
      tpu.vector_store %arg5[%c0_11, %c0_12], %12 {strides = array<i32>} : memref<8x256xf32, #tpu.memory_space<vmem>>, vector<8x256xf32>,
    } else {
    }
    %c0 = arith.constant 0 : index
    %c0_1 = arith.constant 0 : index
    %3 = vector.load %arg5[%c0, %c0_1] : memref<8x256xf32, #tpu.memory_space<vmem>>, vector<8x256xf32>
    %c0_2 = arith.constant 0 : index
    %c0_3 = arith.constant 0 : index
    %4 = vector.load %arg2[%c0_2, %c0_3] : memref<8x256xf32, #tpu.memory_space<vmem>>, vector<8x256xf32>
    %c0_4 = arith.constant 0 : index
    %c0_5 = arith.constant 0 : index
    %5 = vector.load %arg3[%c0_4, %c0_5] : memref<256x256xf32, #tpu.memory_space<vmem>>, vector<256x256xf32>
    %cst = arith.constant dense<0.000000e+00> : vector<8x256xf32>
    %6 = tpu.matmul %4, %5, %cst {dimension_numbers = #tpu.dot_dimension_numbers<[1], [0], [0], [1], [0, 0, 1, 1], [], []>} : vector<8x256xf32>, vector<256x256xf32>, vector<8x256xf32> -> vector<8x256xf32>
    %7 = arith.addf %3, %6 : vector<8x256xf32>
    %c0_6 = arith.constant 0 : index
    %c0_7 = arith.constant 0 : index
    %8 = vector.load %arg5[%c0_6, %c0_7] : memref<8x256xf32, #tpu.memory_space<vmem>>, vector<8x256xf32>
    tpu.vector_store %arg5[%c0_6, %c0_7], %7 {strides = array<i32>} : memref<8x256xf32, #tpu.memory_space<vmem>>, vector<8x256xf32>,
    %c0_i32_8 = arith.constant 0 : i32
    %9 = arith.cmpi eq, %arg1, %c0_i32_8 : i32
    %10 = arith.extui %9 : i1 to i32
    %c0_i32_9 = arith.constant 0 : i32
    %11 = arith.cmpi ne, %10, %c0_i32_9 : i32
    scf.if %11 {
      %c0_10 = arith.constant 0 : index
      %c0_11 = arith.constant 0 : index
      %12 = vector.load %arg5[%c0_10, %c0_11] : memref<8x256xf32, #tpu.memory_space<vmem>>, vector<8x256xf32>
      %c0_12 = arith.constant 0 : index
      %c0_13 = arith.constant 0 : index
      %13 = vector.load %arg4[%c0_12, %c0_13] : memref<8x256xf32, #tpu.memory_space<vmem>>, vector<8x256xf32>
      tpu.vector_store %arg4[%c0_12, %c0_13], %12 {strides = array<i32>} : memref<8x256xf32, #tpu.memory_space<vmem>>, vector<8x256xf32>,
    } else {
    }
    return
  }
  func.func @transform_0(%arg0: i32, %arg1: i32) -> (i32, i32) {
    %c0_i32 = arith.constant 0 : i32
    %c0_i32_0 = arith.constant 0 : i32
    return %c0_i32, %arg1 : i32, i32
  }
  func.func @transform_1(%arg0: i32, %arg1: i32) -> (i32, i32) {
    %c0_i32 = arith.constant 0 : i32
    return %arg1, %arg0 : i32, i32
  }
  func.func @transform_2(%arg0: i32, %arg1: i32) -> (i32, i32) {
    %c0_i32 = arith.constant 0 : i32
    %c0_i32_0 = arith.constant 0 : i32
    return %c0_i32, %arg0 : i32, i32
  }
}

</mosaic_0001>

<llo_original>
// kernel: tpu_custom_call.1
$region0: #{tpu_custom_call.1}
  #allocation0 [shape = 'u32[]', space=smem, size = 0x4, offset = 0x4, fixed_abs, tag = 'smem constant byte address 0x4 - core index']
  #allocation1 [shape = 'u32[144,128]{1,0:T(1,128)}', space=vmem, size = 0x12000, scoped, tag = 'internal scratch']
  #allocation2 [shape = 'f32[8,256]{1,0:T(8,128)}', space=vmem, size = 0x2000, scoped, tag = 'scratch operand']
  %s0 = inlined_call_operand.hbm [shape: f32[8,256], index: 0, kind: input, shape index: {}]
  %s1 = inlined_call_operand.hbm [shape: f32[256,256], index: 1, kind: input, shape index: {}]
  %s2 = inlined_call_operand.hbm [shape: f32[8,256], index: 2, kind: output, shape index: {}]
  %s3 = sld [smem:[#allocation0]]
  $region34: #{tpu_custom_call.1} parent=0
    _
  %s5 = ssub.s32 1, %s3
  %s6 = scalar_select 0, %s5, %s3
  $region1: #{tpu_custom_call.1} parent=0
    #allocation3 [shape = 'u8[8192]{0}', space=vmem, size = 0x2000, scoped, tag = 'input window, operand 0, single buffered']
    #allocation4 [shape = 's32[1]{0}', space=sflag, size = 0x4, scoped, tag = 'scoped memory for tpu_custom_call.1']
    #allocation5 [shape = 's32[1]{0}', space=sflag, size = 0x4, scoped, tag = 'scoped memory for tpu_custom_call.1']
    #allocation6 [shape = 'u8[262144]{0}', space=vmem, size = 0x40000, scoped, tag = 'input window, operand 1, single buffered']
    #allocation7 [shape = 's32[1]{0}', space=sflag, size = 0x4, scoped, tag = 'scoped memory for tpu_custom_call.1']
    #allocation8 [shape = 'u8[8192]{0}', space=vmem, size = 0x2000, scoped, tag = 'output window, operand 0, single buffered']
    %7 = vsyncpa [#allocation4], 0
    %8 = vsyncpa [#allocation7], 0
    %9 = vsyncpa [#allocation5], 0
    // Predicated region
    $region2: #{tpu_custom_call.1} parent=1 // pred_check
      _
    $region3: #{tpu_custom_call.1} parent=1 // pred_check_branch
      %11 = sbr.rel (0) target = $region5
    $region4: #{tpu_custom_call.1} parent=1 // pred_region
      %s13 = ssub.s32 256, 256
      %14 = vsyncadd [#allocation4], %s13
      %s16 = sshll.u32 [#allocation3], 4
      %s17 = int_to_ptr.vmem [resolvable:$true] %s16
      %19 = dma.hbm_to_vmem [thread:$0]  %s0, 256, %s17, [#allocation4]
    $region5: #{tpu_custom_call.1} parent=1 // pred_fallthru
      _
    // Predicated region
    $region6: #{tpu_custom_call.1} parent=1 // pred_check
      _
    $region7: #{tpu_custom_call.1} parent=1 // pred_check_branch
      %21 = sbr.rel (0) target = $region9
    $region8: #{tpu_custom_call.1} parent=1 // pred_region
      %s23 = ssub.s32 8192, 8192
      %24 = vsyncadd [#allocation7], %s23
      %s25 = sshll.u32 [#allocation6], 4
      %s26 = int_to_ptr.vmem [resolvable:$true] %s25
      %31 = dma.hbm_to_vmem [thread:$0]  %s1, 8192, %s26, [#allocation7], 256, 256, 16
    $region9: #{tpu_custom_call.1} parent=1 // pred_fallthru
      _
    // Predicated region
    $region10: #{tpu_custom_call.1} parent=1 // pred_check
      _
    $region11: #{tpu_custom_call.1} parent=1 // pred_check_branch
      %33 = sbr.rel (0) target = $region13
    $region12: #{tpu_custom_call.1} parent=1 // pred_region
      %34 = dma.done [#allocation4], 256
    $region13: #{tpu_custom_call.1} parent=1 // pred_fallthru
      _
    // Predicated region
    $region14: #{tpu_custom_call.1} parent=1 // pred_check
      _
    $region15: #{tpu_custom_call.1} parent=1 // pred_check_branch
      %36 = sbr.rel (0) target = $region17
    $region16: #{tpu_custom_call.1} parent=1 // pred_region
      %37 = dma.done [#allocation7], 8192
    $region17: #{tpu_custom_call.1} parent=1 // pred_fallthru
      _
    %p38 = scmp.eq.s32.totalorder 0, 0
    // Predicated region
    $region18: #{tpu_custom_call.1} parent=1 // pred_check
      %p39 = pneg %p38
    $region19: #{tpu_custom_call.1} parent=1 // pred_check_branch
      %41 = sbr.rel (%p39) target = $region21
    $region20: #{tpu_custom_call.1} parent=1 // pred_region
      %42 = vst [vmem:[#allocation2] sm:$0xff] 0.0
      %43 = vst [vmem:[#allocation2 + $0x8] sm:$0xff] 0.0
    $region21: #{tpu_custom_call.1} parent=1 // pred_fallthru
      _
    %v44 = vld [vmem:[#allocation2] sm:$0xff]
    %v45 = vld [vmem:[#allocation2 + $0x8] sm:$0xff]
    %v46 = vld [vmem:[#allocation3] sm:$0xff]
    %v47 = vld [vmem:[#allocation3 + $0x8] sm:$0xff]
    %v48 = vld [vmem:[#allocation6] sm:$0xff]
    %v49 = vld [vmem:[#allocation6 + $0x8] sm:$0xff]
    %v50 = vld [vmem:[#allocation6 + $0x10] sm:$0xff]
    %v51 = vld [vmem:[#allocation6 + $0x18] sm:$0xff]
    %v52 = vld [vmem:[#allocation6 + $0x20] sm:$0xff]
    %v53 = vld [vmem:[#allocation6 + $0x28] sm:$0xff]
    %v54 = vld [vmem:[#allocation6 + $0x30] sm:$0xff]
    %v55 = vld [vmem:[#allocation6 + $0x38] sm:$0xff]
    %v56 = vld [vmem:[#allocation6 + $0x40] sm:$0xff]
    %v57 = vld [vmem:[#allocation6 + $0x48] sm:$0xff]
    %v58 = vld [vmem:[#allocation6 + $0x50] sm:$0xff]
    %v59 = vld [vmem:[#allocation6 + $0x58] sm:$0xff]
    %v60 = vld [vmem:[#allocation6 + $0x60] sm:$0xff]
    %v61 = vld [vmem:[#allocation6 + $0x68] sm:$0xff]
    %v62 = vld [vmem:[#allocation6 + $0x70] sm:$0xff]
    %v63 = vld [vmem:[#allocation6 + $0x78] sm:$0xff]
    %v64 = vld [vmem:[#allocation6 + $0x80] sm:$0xff]
    %v65 = vld [vmem:[#allocation6 + $0x88] sm:$0xff]
    %v66 = vld [vmem:[#allocation6 + $0x90] sm:$0xff]
    %v67 = vld [vmem:[#allocation6 + $0x98] sm:$0xff]
    %v68 = vld [vmem:[#allocation6 + $0xa0] sm:$0xff]
    %v69 = vld [vmem:[#allocation6 + $0xa8] sm:$0xff]
    %v70 = vld [vmem:[#allocation6 + $0xb0] sm:$0xff]
    %v71 = vld [vmem:[#allocation6 + $0xb8] sm:$0xff]
    %v72 = vld [vmem:[#allocation6 + $0xc0] sm:$0xff]
    %v73 = vld [vmem:[#allocation6 + $0xc8] sm:$0xff]
    %v74 = vld [vmem:[#allocation6 + $0xd0] sm:$0xff]
    %v75 = vld [vmem:[#allocation6 + $0xd8] sm:$0xff]
    %v76 = vld [vmem:[#allocation6 + $0xe0] sm:$0xff]
    %v77 = vld [vmem:[#allocation6 + $0xe8] sm:$0xff]
    %v78 = vld [vmem:[#allocation6 + $0xf0] sm:$0xff]
    %v79 = vld [vmem:[#allocation6 + $0xf8] sm:$0xff]
    %v80 = vld [vmem:[#allocation6 + $0x100] sm:$0xff]
    %v81 = vld [vmem:[#allocation6 + $0x108] sm:$0xff]
    %v82 = vld [vmem:[#allocation6 + $0x110] sm:$0xff]
    %v83 = vld [vmem:[#allocation6 + $0x118] sm:$0xff]
    %v84 = vld [vmem:[#allocation6 + $0x120] sm:$0xff]
    %v85 = vld [vmem:[#allocation6 + $0x128] sm:$0xff]
    %v86 = vld [vmem:[#allocation6 + $0x130] sm:$0xff]
    %v87 = vld [vmem:[#allocation6 + $0x138] sm:$0xff]
    %v88 = vld [vmem:[#allocation6 + $0x140] sm:$0xff]
    %v89 = vld [vmem:[#allocation6 + $0x148] sm:$0xff]
    %v90 = vld [vmem:[#allocation6 + $0x150] sm:$0xff]
    %v91 = vld [vmem:[#allocation6 + $0x158] sm:$0xff]
    %v92 = vld [vmem:[#allocation6 + $0x160] sm:$0xff]
    %v93 = vld [vmem:[#allocation6 + $0x168] sm:$0xff]
    %v94 = vld [vmem:[#allocation6 + $0x170] sm:$0xff]
    %v95 = vld [vmem:[#allocation6 + $0x178] sm:$0xff]
    %v96 = vld [vmem:[#allocation6 + $0x180] sm:$0xff]
    %v97 = vld [vmem:[#allocation6 + $0x188] sm:$0xff]
    %v98 = vld [vmem:[#allocation6 + $0x190] sm:$0xff]
    %v99 = vld [vmem:[#allocation6 + $0x198] sm:$0xff]
    %v100 = vld [vmem:[#allocation6 + $0x1a0] sm:$0xff]
    %v101 = vld [vmem:[#allocation6 + $0x1a8] sm:$0xff]
    %v102 = vld [vmem:[#allocation6 + $0x1b0] sm:$0xff]
    %v103 = vld [vmem:[#allocation6 + $0x1b8] sm:$0xff]
    %v104 = vld [vmem:[#allocation6 + $0x1c0] sm:$0xff]
    %v105 = vld [vmem:[#allocation6 + $0x1c8] sm:$0xff]
    %v106 = vld [vmem:[#allocation6 + $0x1d0] sm:$0xff]
    %v107 = vld [vmem:[#allocation6 + $0x1d8] sm:$0xff]
    %v108 = vld [vmem:[#allocation6 + $0x1e0] sm:$0xff]
    %v109 = vld [vmem:[#allocation6 + $0x1e8] sm:$0xff]
    %v110 = vld [vmem:[#allocation6 + $0x1f0] sm:$0xff]
    %v111 = vld [vmem:[#allocation6 + $0x1f8] sm:$0xff]
    %112 = vmatprep.subr.mxu0 %v79
    %113 = vmatpush1.msra.mxu0 %v78
    %114 = vmatprep.subr.mxu0 %v77
    %115 = vmatpush1.msra.mxu0 %v76
    %116 = vmatprep.subr.mxu0 %v75
    %117 = vmatpush1.msra.mxu0 %v74
    %118 = vmatprep.subr.mxu0 %v73
    %119 = vmatpush1.msra.mxu0 %v72
    %120 = vmatprep.subr.mxu0 %v71
    %121 = vmatpush1.msra.mxu0 %v70
    %122 = vmatprep.subr.mxu0 %v69
    %123 = vmatpush1.msra.mxu0 %v68
    %124 = vmatprep.subr.mxu0 %v67
    %125 = vmatpush1.msra.mxu0 %v66
    %126 = vmatprep.subr.mxu0 %v65
    %127 = vmatpush1.msra.mxu0 %v64
    %128 = vmatprep.subr.mxu0 %v63
    %129 = vmatpush1.msra.mxu0 %v62
    %130 = vmatprep.subr.mxu0 %v61
    %131 = vmatpush1.msra.mxu0 %v60
    %132 = vmatprep.subr.mxu0 %v59
    %133 = vmatpush1.msra.mxu0 %v58
    %134 = vmatprep.subr.mxu0 %v57
    %135 = vmatpush1.msra.mxu0 %v56
    %136 = vmatprep.subr.mxu0 %v55
    %137 = vmatpush1.msra.mxu0 %v54
    %138 = vmatprep.subr.mxu0 %v53
    %139 = vmatpush1.msra.mxu0 %v52
    %140 = vmatprep.subr.mxu0 %v51
    %141 = vmatpush1.msra.mxu0 %v50
    %142 = vmatprep.subr.mxu0 %v49
    %143 = vmatpush1.msra.mxu0 %v48
    %144 = vmatprep.subr.mxu0 %v111
    %145 = vmatpush2.msra.mxu0 %v110
    %146 = vmatprep.subr.mxu0 %v109
    %147 = vmatpush2.msra.mxu0 %v108
    %148 = vmatprep.subr.mxu0 %v107
    %149 = vmatpush2.msra.mxu0 %v106
    %150 = vmatprep.subr.mxu0 %v105
    %151 = vmatpush2.msra.mxu0 %v104
    %152 = vmatprep.subr.mxu0 %v103
    %153 = vmatpush2.msra.mxu0 %v102
    %154 = vmatprep.subr.mxu0 %v101
    %155 = vmatpush2.msra.mxu0 %v100
    %156 = vmatprep.subr.mxu0 %v99
    %157 = vmatpush2.msra.mxu0 %v98
    %158 = vmatprep.subr.mxu0 %v97
    %159 = vmatpush2.msra.mxu0 %v96
    %160 = vmatprep.subr.mxu0 %v95
    %161 = vmatpush2.msra.mxu0 %v94
    %162 = vmatprep.subr.mxu0 %v93
    %163 = vmatpush2.msra.mxu0 %v92
    %164 = vmatprep.subr.mxu0 %v91
    %165 = vmatpush2.msra.mxu0 %v90
    %166 = vmatprep.subr.mxu0 %v89
    %167 = vmatpush2.msra.mxu0 %v88
    %168 = vmatprep.subr.mxu0 %v87
    %169 = vmatpush2.msra.mxu0 %v86
    %170 = vmatprep.subr.mxu0 %v85
    %171 = vmatpush2.msra.mxu0 %v84
    %172 = vmatprep.subr.mxu0 %v83
    %173 = vmatpush2.msra.mxu0 %v82
    %174 = vmatprep.subr.mxu0 %v81
    %175 = vmatpush2.msra.mxu0 %v80
    %176 = vmatprep.mubr.f32.mxu0 %v47
    %177 = vmatmul.mubr.f32.gmra.mxu0 %v46
    %v178 = vpop.f32.mrf.mxu0
    %v179 = vadd.f32 0.0, %v178
    %v180 = vpop.f32.mrf.mxu0
    %v181 = vadd.f32 0.0, %v180
    %182 = vdwg.mxu0
    %v183 = vadd.f32 %v44, %v179
    %v184 = vadd.f32 %v45, %v181
    %185 = vst [vmem:[#allocation2] sm:$0xff] %v183
    %186 = vst [vmem:[#allocation2 + $0x8] sm:$0xff] %v184
    // Predicated region
    $region22: #{tpu_custom_call.1} parent=1 // pred_check
      %p187 = pneg %p38
    $region23: #{tpu_custom_call.1} parent=1 // pred_check_branch
      %189 = sbr.rel (%p187) target = $region25
    $region24: #{tpu_custom_call.1} parent=1 // pred_region
      %v190 = vld [vmem:[#allocation2] sm:$0xff]
      %v191 = vld [vmem:[#allocation2 + $0x8] sm:$0xff]
      %192 = vst [vmem:[#allocation8] sm:$0xff] %v190
      %193 = vst [vmem:[#allocation8 + $0x8] sm:$0xff] %v191
    $region25: #{tpu_custom_call.1} parent=1 // pred_fallthru
      _
    // Predicated region
    $region26: #{tpu_custom_call.1} parent=1 // pred_check
      _
    $region27: #{tpu_custom_call.1} parent=1 // pred_check_branch
      %195 = sbr.rel (0) target = $region29
    $region28: #{tpu_custom_call.1} parent=1 // pred_region
      %s197 = ssub.s32 256, 256
      %198 = vsyncadd [#allocation5], %s197
      %s200 = sshll.u32 [#allocation8], 4
      %s201 = int_to_ptr.vmem [resolvable:$true] %s200
      %203 = dma.vmem_to_hbm [thread:$0]  %s201, 256, %s2, [#allocation5]
    $region29: #{tpu_custom_call.1} parent=1 // pred_fallthru
      _
    // Predicated region
    $region30: #{tpu_custom_call.1} parent=1 // pred_check
      _
    $region31: #{tpu_custom_call.1} parent=1 // pred_check_branch
      %205 = sbr.rel (0) target = $region33
    $region32: #{tpu_custom_call.1} parent=1 // pred_region
      %206 = dma.done [#allocation5], 256
    $region33: #{tpu_custom_call.1} parent=1 // pred_fallthru
      _
    %207 = vsyncpa [#allocation4], 1
    %208 = vsyncpa [#allocation7], 1
    %209 = vsyncpa [#allocation5], 1

</llo_original>
